<compile_context>
chip_gen: v6e
topology: v6e:2x2x1
jax: 0.10.0
libtpu: 0.0.40
codegen_flags: <defaults>
</compile_context>

<pallas_src>
import jax
import jax.numpy as jnp
from jax.experimental import pallas as pl
from jax.experimental.pallas import tpu as pltpu

LANE = 128
# Below this many bytes, skip the kernel: a standalone pallas_call has fixed
# launch/per-step overhead and forces a dedicated HBM read+write, whereas XLA
# fuses a scalar add into producers/consumers for free.
_MIN_KERNEL_BYTES = 256 * 1024


def _sublane_pack(dtype) -> int:
    # Sub-32-bit dtypes pack along sublanes; keep row counts at whole-vreg
    # multiples (8 for 4-byte, 16 for 2-byte, 32 for 1-byte dtypes).
    return max(8, 32 // jnp.dtype(dtype).itemsize)


def _block_budget():
    """Generation-aware (block_bytes, vmem_limit_bytes)."""
    try:
        kind = jax.devices()[0].device_kind.lower()
    except Exception:
        kind = ""
    if "v5 lite" in kind or "v5e" in kind or "v5litepod" in kind:
        # v5e: ~0.8 TB/s HBM, 16 MiB default scoped VMEM -> 4 MiB blocks are
        # already on the roofline plateau and stay inside the budget.
        return 4 * 1024 * 1024, 32 * 1024 * 1024
    # v6e / v7x (and other generations): 8 MiB blocks amortize the ~0.35 us
    # per-grid-step overhead.  2 in-bufs + 2 out-bufs = 32 MiB; a 40 MiB limit
    # still leaves >20 MiB headroom of v7x's 64 MiB physical VMEM.
    return 8 * 1024 * 1024, 40 * 1024 * 1024


def _add_bias_kernel(val_ref, x_ref, o_ref):
    # DMA/HBM-bound elementwise op; the SMEM scalar read + broadcast and the
    # (usually no-op) cast ride in otherwise idle scalar/VPU slots.
    v = val_ref[0, 0].astype(o_ref.dtype)
    o_ref[...] = x_ref[...].astype(o_ref.dtype) + v


def add_bias(x: jax.Array, val) -> jax.Array:
    """Elementwise `x + val`; hot path runs inside a Pallas TPU kernel."""
    out_dtype = jnp.result_type(x, val)
    itemsize = jnp.dtype(x.dtype).itemsize
    n = x.size

    # Small-input fast path: let XLA fuse the scalar add (no extra HBM pass).
    if n * itemsize < _MIN_KERNEL_BYTES:
        return x + val

    pack = _sublane_pack(x.dtype)

    # Widest lane dim (multiple of 128) dividing n exactly, preferring widths
    # that still give >= `pack` rows (whole-vreg rows, unmasked vst).
    lane_w = None
    for w in (2048, 1024, 512, 256, 128):
        if n % w == 0 and (n // w) >= pack:
            lane_w = w
            break
    if lane_w is None:
        for w in (2048, 1024, 512, 256, 128):
            if n % w == 0:
                lane_w = w
                break
    if lane_w is None:
        # Awkward size (element count not a multiple of 128): pad + slice would
        # add two full HBM passes to a mem-bound op, so just let XLA add here.
        return x + val

    rows = n // lane_w
    # NOTE: for non-row-major / transposed inputs this reshape forces a
    # relayout copy before the kernel (extra HBM pass) — unavoidable here.
    x2d = x.reshape(rows, lane_w)

    block_bytes, vmem_limit = _block_budget()
    row_bytes = lane_w * itemsize

    # Block sublane extent: byte-budget target, multiple of the sublane pack,
    # never (much) larger than the array itself.
    tile_rows = max(pack, (block_bytes // row_bytes) // pack * pack)
    tile_rows = min(tile_rows, pl.cdiv(rows, pack) * pack)
    # Guarantee >= 2 grid blocks whenever the rows can be split, so v7x can
    # shard the "parallel" axis across its 2 TensorCores and block i+1 input
    # DMA overlaps block i output DMA.
    if rows >= 2 * pack:
        tile_rows = min(tile_rows, max(pack, (rows // 2) // pack * pack))

    grid = (pl.cdiv(rows, tile_rows),)  # ragged last block is masked by Pallas

    # Scalar bias as a (1,1) SMEM operand: no recompile per bias value and it
    # supports traced / learned biases.  Kept 32-bit in SMEM, cast in-kernel.
    smem_dtype = (
        jnp.float32 if jnp.issubdtype(out_dtype, jnp.floating) else jnp.int32
    )
    val_arr = jnp.asarray(val, dtype=smem_dtype).reshape(1, 1)

    out2d = pl.pallas_call(
        _add_bias_kernel,
        out_shape=jax.ShapeDtypeStruct((rows, lane_w), out_dtype),
        grid_spec=pltpu.PrefetchScalarGridSpec(
            num_scalar_prefetch=0,
            grid=grid,
            in_specs=[
                pl.BlockSpec(memory_space=pltpu.MemorySpace.SMEM),
                pl.BlockSpec((tile_rows, lane_w), lambda i: (i, 0)),
            ],
            out_specs=pl.BlockSpec((tile_rows, lane_w), lambda i: (i, 0)),
        ),
        compiler_params=pltpu.CompilerParams(
            dimension_semantics=("parallel",),
            vmem_limit_bytes=vmem_limit,
        ),
    )(val_arr, x2d)

    return out2d.reshape(x.shape)


if __name__ == "__main__":
    key = jax.random.PRNGKey(0)
    k1, k2 = jax.random.split(key)
    val = 0.5  # the module's scalar bias (AddBias(val=0.5))

    # Small NCHW feature map, consistent with a typical conv activation.
    # Takes the small-input fast path (XLA-fused scalar add).
    x_small = jax.random.normal(k1, (2, 4, 16, 16), dtype=jnp.float32)
    out_small = jax.block_until_ready(add_bias(x_small, val))
    ref_small = x_small + val
    assert out_small.shape == ref_small.shape and out_small.dtype == ref_small.dtype
    assert jnp.allclose(out_small, ref_small, atol=1e-6, rtol=1e-6)

    # Larger feature map that goes through the Pallas kernel path (512 KiB).
    x_big = jax.random.normal(k2, (4, 8, 64, 64), dtype=jnp.float32)
    out_big = jax.block_until_ready(add_bias(x_big, val))
    ref_big = x_big + val
    assert out_big.shape == ref_big.shape and out_big.dtype == ref_big.dtype
    assert jnp.allclose(out_big, ref_big, atol=1e-6, rtol=1e-6)

    # bf16 through the kernel path (exercises sublane-pack=16 handling).
    x_bf16 = x_big.astype(jnp.bfloat16)
    out_bf16 = jax.block_until_ready(add_bias(x_bf16, val))
    ref_bf16 = x_bf16 + val
    assert out_bf16.shape == ref_bf16.shape and out_bf16.dtype == ref_bf16.dtype
    assert jnp.allclose(
        out_bf16.astype(jnp.float32), ref_bf16.astype(jnp.float32),
        atol=1e-2, rtol=1e-2,
    )

    print("KERNEL_OK")
</pallas_src>

<mosaic_0001>
module attributes {stable_mosaic.version = 11 : i64} {
  func.func @_add_bias_kernel(%arg0: i32, %arg1: memref<1x1xf32, #tpu.memory_space<smem>>, %arg2: memref<32x2048xf32, #tpu.memory_space<vmem>>, %arg3: memref<32x2048xf32, #tpu.memory_space<vmem>>) attributes {dimension_semantics = [#tpu.dimension_semantics<parallel>], iteration_bounds = array<i64: 2>, scalar_prefetch = 0 : i64, scratch_operands = 0 : i64, tpu.core_type = #tpu.core_type<tc>, window_params = [{transform_indices = @transform_0, window_bounds = array<i64: 1, 1>}, {transform_indices = @transform_1, window_bounds = array<i64: 32, 2048>}, {transform_indices = @transform_2, window_bounds = array<i64: 32, 2048>}]} {
    %c0 = arith.constant 0 : index
    %c0_0 = arith.constant 0 : index
    %0 = memref.load %arg1[%c0, %c0_0] : memref<1x1xf32, #tpu.memory_space<smem>>
    %c0_1 = arith.constant 0 : index
    %c0_2 = arith.constant 0 : index
    %1 = vector.load %arg2[%c0_1, %c0_2] : memref<32x2048xf32, #tpu.memory_space<vmem>>, vector<32x2048xf32>
    %2 = vector.broadcast %0 : f32 to vector<32x2048xf32>
    %3 = arith.addf %1, %2 : vector<32x2048xf32>
    %c0_3 = arith.constant 0 : index
    %c0_4 = arith.constant 0 : index
    %4 = vector.load %arg3[%c0_3, %c0_4] : memref<32x2048xf32, #tpu.memory_space<vmem>>, vector<32x2048xf32>
    tpu.vector_store %arg3[%c0_3, %c0_4], %3 {strides = array<i32>} : memref<32x2048xf32, #tpu.memory_space<vmem>>, vector<32x2048xf32>,
    return
  }
  func.func @transform_0(%arg0: i32) -> (i32, i32) {
    %c0_i32 = arith.constant 0 : i32
    %c0_i32_0 = arith.constant 0 : i32
    %c0_i32_1 = arith.constant 0 : i32
    return %c0_i32, %c0_i32_0 : i32, i32
  }
  func.func @transform_1(%arg0: i32) -> (i32, i32) {
    %c0_i32 = arith.constant 0 : i32
    %c0_i32_0 = arith.constant 0 : i32
    return %arg0, %c0_i32 : i32, i32
  }
  func.func @transform_2(%arg0: i32) -> (i32, i32) {
    %c0_i32 = arith.constant 0 : i32
    %c0_i32_0 = arith.constant 0 : i32
    return %arg0, %c0_i32 : i32, i32
  }
}

</mosaic_0001>

<llo_original>
// kernel: tpu_custom_call.1
$region0: #{tpu_custom_call.1}
  #allocation0 [shape = 'u32[]', space=smem, size = 0x4, offset = 0x4, fixed_abs, tag = 'smem constant byte address 0x4 - core index']
  #allocation1 [shape = 'u32[144,128]{1,0:T(1,128)}', space=vmem, size = 0x12000, scoped, tag = 'internal scratch']
  #allocation2 [shape = 'f32[1,1]{1,0:T(1,128)S(6)}', space=smem, size = 0x200, scoped, tag = 'scoped memory for tpu_custom_call.1']
  %s0 = inlined_call_operand.<no memory space> [shape: f32[1,1], index: 0, kind: input, shape index: {}]
  %s1 = inlined_call_operand.hbm [shape: f32[64,2048], index: 1, kind: input, shape index: {}]
  %s2 = inlined_call_operand.hbm [shape: f32[64,2048], index: 2, kind: output, shape index: {}]
  %s3 = sld [smem:[#allocation0]]
  $region45: #{tpu_custom_call.1} parent=0
    _
  %s5 = ssub.s32 1, %s3
  %s6 = scalar_select 0, %s5, %s3
  %7 = sst [smem:[#allocation2]] %s0
  $region1: #{tpu_custom_call.1} parent=0
    #allocation3 [shape = 'u8[524288]{0}', space=vmem, size = 0x80000, scoped, tag = 'input window, operand 1']
    #allocation4 [shape = 's32[2]{0}', space=sflag, size = 0x8, scoped, tag = 'scoped memory for tpu_custom_call.1']
    #allocation5 [shape = 's32[2]{0}', space=sflag, size = 0x8, scoped, tag = 'scoped memory for tpu_custom_call.1']
    #allocation6 [shape = 'u8[524288]{0}', space=vmem, size = 0x80000, scoped, tag = 'output window, operand 0']
    %8 = vsyncpa [#allocation4], 0
    %s9 = scalar_lea.sflag [#allocation4], 1
    %10 = vsyncpa %s9, 0
    %11 = vsyncpa [#allocation5], 0
    %s12 = scalar_lea.sflag [#allocation5], 1
    %13 = vsyncpa %s12, 0
    loop: start=0, step=1, limit=4
    $region2: #{tpu_custom_call.1} parent=1 // loop_pre_header
      _
    $region3: #{tpu_custom_call.1} parent=1 // loop_header
      %s15 = sphi 0, %s19
      %p16 = scmp.ge.s32.totalorder %s15, 4
      %s23 = sphi 0, %s23
      %s25 = sphi 0, %s23
      %s26 = sphi 0, %s25
      %s40 = sphi 0, %s26
      %s46 = sphi 0, %s48
      %s49 = sphi 0, %s46
      %s50 = sphi 0, %s49
      %s66 = sphi 0, %s50
      %s72 = sphi 0, %s74
      %s75 = sphi 0, %s72
      %s76 = sphi 0, %s75
      %s92 = sphi 0, %s76
    $region4: #{tpu_custom_call.1} parent=1 // loop_header_branch
      %18 = sbr.rel (%p16) target = $region8
    $region5: #{tpu_custom_call.1} parent=1 // loop_body
      %s20 = ssub.s32 %s15, 1
      %s21 = ssub.s32 %s15, 2
      %s22 = sadd.s32 %s15, 1
      %s24 = sadd.s32 %s23, 1
      %p27 = scmp.eq.s32.totalorder %s15, 1
      %p28 = scmp.ne.s32.totalorder %s23, %s25
      %p29 = scmp.eq.s32.totalorder %s15, 0
      %p30 = por %p28, %p29
      %p31 = scmp.ne.s32.totalorder %s23, %s25
      %p32 = scmp.eq.s32.totalorder %s20, 1
      %p33 = por %p31, %p32
      %p34 = scmp.ne.s32.totalorder %s25, %s26
      %p35 = scmp.eq.s32.totalorder %s20, 0
      %p36 = por %p34, %p35
      %p37 = scmp.ne.s32.totalorder %s25, %s26
      %p38 = scmp.eq.s32.totalorder %s21, 1
      %p39 = por %p37, %p38
      %p41 = scmp.ne.s32.totalorder %s26, %s40
      %p42 = scmp.eq.s32.totalorder %s21, 0
      %p43 = por %p41, %p42
      %s44 = ssub.s32 %s15, %s22
      %p45 = scmp.eq.s32.totalorder %s44, 0
      %s47 = sadd.s32 %s46, 1
      %s48 = scalar_select %p45, %s46, %s47
      %p51 = pneg %p45
      %p52 = scmp.eq.s32.totalorder %s15, 1
      %p53 = por %p51, %p52
      %p54 = scmp.ne.s32.totalorder %s46, %s49
      %p55 = scmp.eq.s32.totalorder %s15, 0
      %p56 = por %p54, %p55
      %p57 = scmp.ne.s32.totalorder %s46, %s49
      %p58 = scmp.eq.s32.totalorder %s20, 1
      %p59 = por %p57, %p58
      %p60 = scmp.ne.s32.totalorder %s49, %s50
      %p61 = scmp.eq.s32.totalorder %s20, 0
      %p62 = por %p60, %p61
      %p63 = scmp.ne.s32.totalorder %s49, %s50
      %p64 = scmp.eq.s32.totalorder %s21, 1
      %p65 = por %p63, %p64
      %p67 = scmp.ne.s32.totalorder %s50, %s66
      %p68 = scmp.eq.s32.totalorder %s21, 0
      %p69 = por %p67, %p68
      %s70 = ssub.s32 %s15, %s22
      %p71 = scmp.eq.s32.totalorder %s70, 0
      %s73 = sadd.s32 %s72, 1
      %s74 = scalar_select %p71, %s72, %s73
      %p77 = pneg %p71
      %p78 = scmp.eq.s32.totalorder %s15, 1
      %p79 = por %p77, %p78
      %p80 = scmp.ne.s32.totalorder %s72, %s75
      %p81 = scmp.eq.s32.totalorder %s15, 0
      %p82 = por %p80, %p81
      %p83 = scmp.ne.s32.totalorder %s72, %s75
      %p84 = scmp.eq.s32.totalorder %s20, 1
      %p85 = por %p83, %p84
      %p86 = scmp.ne.s32.totalorder %s75, %s76
      %p87 = scmp.eq.s32.totalorder %s20, 0
      %p88 = por %p86, %p87
      %p89 = scmp.ne.s32.totalorder %s75, %s76
      %p90 = scmp.eq.s32.totalorder %s21, 1
      %p91 = por %p89, %p90
      %p93 = scmp.ne.s32.totalorder %s76, %s92
      %p94 = scmp.eq.s32.totalorder %s21, 0
      %p95 = por %p93, %p94
      %p96 = scmp.le.s32.totalorder 1, %s15
      %p97 = scmp.lt.s32.totalorder %s15, 3
      %p98 = pnand %p96, %p97
      %p99 = pneg %p98
      // Predicated region
      $region9: #{tpu_custom_call.1} parent=5 // pred_check
        _
      $region10: #{tpu_custom_call.1} parent=5 // pred_check_branch
        %101 = sbr.rel (%p98) target = $region12
      $region11: #{tpu_custom_call.1} parent=5 // pred_region
        %s102 = ssub.s32 %s15, 1
        // Predicated region
        $region13: #{tpu_custom_call.1} parent=11 // pred_check
          %p103 = pneg %p36
        $region14: #{tpu_custom_call.1} parent=11 // pred_check_branch
          %105 = sbr.rel (%p103) target = $region16
        $region15: #{tpu_custom_call.1} parent=11 // pred_region
          _
        $region16: #{tpu_custom_call.1} parent=11 // pred_fallthru
          _
      $region12: #{tpu_custom_call.1} parent=5 // pred_fallthru
        _
      %p106 = scmp.lt.s32.totalorder %s15, 2
      // Predicated region
      $region17: #{tpu_custom_call.1} parent=5 // pred_check
        %p107 = pneg %p106
      $region18: #{tpu_custom_call.1} parent=5 // pred_check_branch
        %109 = sbr.rel (%p107) target = $region20
      $region19: #{tpu_custom_call.1} parent=5 // pred_region
        // Predicated region
        $region21: #{tpu_custom_call.1} parent=19 // pred_check
          %p110 = pneg %p56
        $region22: #{tpu_custom_call.1} parent=19 // pred_check_branch
          %112 = sbr.rel (%p110) target = $region24
        $region23: #{tpu_custom_call.1} parent=19 // pred_region
          %s113 = sand.u32 %s46, 1
          %s114 = scalar_lea.sflag [#allocation4], %s113
          %s115 = sand.u32 %s46, 1
          %s116 = smul.addr %s115, 512
          %s117 = scalar_lea.vmem [#allocation3], %s116
          %s118 = smul.u32 4, %s15
          %s120 = ssub.s32 8192, 8192
          %121 = vsyncadd %s114, %s120
          %s122 = smul.addr %s118, 16
          %s123 = smul.addr %s122, 128
          %s124 = scalar_lea.hbm %s1, %s123
          %s125 = sshll.u32 %s117, 4
          %s126 = int_to_ptr.vmem [resolvable:$true] %s125
          %131 = dma.hbm_to_vmem [thread:$0]  %s124, 8192, %s126, %s114, 2048, 2048, 128
        $region24: #{tpu_custom_call.1} parent=19 // pred_fallthru
          _
      $region20: #{tpu_custom_call.1} parent=5 // pred_fallthru
        _
      %p132 = scmp.le.s32.totalorder 1, %s15
      %p133 = scmp.lt.s32.totalorder %s15, 3
      %p134 = pnand %p132, %p133
      %p135 = pneg %p134
      // Predicated region
      $region25: #{tpu_custom_call.1} parent=5 // pred_check
        _
      $region26: #{tpu_custom_call.1} parent=5 // pred_check_branch
        %137 = sbr.rel (%p134) target = $region28
      $region27: #{tpu_custom_call.1} parent=5 // pred_region
        %s138 = ssub.s32 %s15, 1
        %s139 = sand.u32 %s49, 1
        %s140 = scalar_lea.sflag [#allocation4], %s139
        %s141 = sand.u32 %s49, 1
        %s142 = smul.addr %s141, 512
        %s143 = scalar_lea.vmem [#allocation3], %s142
        // Predicated region
        $region29: #{tpu_custom_call.1} parent=27 // pred_check
          %p144 = pneg %p62
        $region30: #{tpu_custom_call.1} parent=27 // pred_check_branch
          %146 = sbr.rel (%p144) target = $region32
        $region31: #{tpu_custom_call.1} parent=27 // pred_region
          %147 = dma.done %s140, 8192
        $region32: #{tpu_custom_call.1} parent=27 // pred_fallthru
          _
        %p148 = pneg %p36
        %p149 = pneg %p33
        %s150 = sand.u32 %s49, 1
        %s151 = scalar_lea.sflag [#allocation4], %s150
        %s152 = sand.u32 %s49, 1
        %s153 = smul.addr %s152, 512
        %s154 = scalar_lea.vmem [#allocation3], %s153
        %p155 = pneg %p62
        %p156 = pneg %p59
        %p157 = pneg %p88
        %p158 = pneg %p85
        %s159 = sand.u32 %s75, 1
        %s160 = scalar_lea.sflag [#allocation5], %s159
        %s161 = sand.u32 %s75, 1
        %s162 = smul.addr %s161, 512
        %s163 = scalar_lea.vmem [#allocation6], %s162
        %s164 = smul.u32 4, %s20
        %s165 = smul.u32 4, %s20
        %s166 = sld [smem:[#allocation2]]
        %v167 = vld [vmem:[%s143] sm:$0xff]
        %v168 = vld [vmem:[%s143 + $0x8] sm:$0xff]
        %v169 = vld [vmem:[%s143 + $0x10] sm:$0xff]
        %v170 = vld [vmem:[%s143 + $0x18] sm:$0xff]
        %v171 = vld [vmem:[%s143 + $0x20] sm:$0xff]
        %v172 = vld [vmem:[%s143 + $0x28] sm:$0xff]
        %v173 = vld [vmem:[%s143 + $0x30] sm:$0xff]
        %v174 = vld [vmem:[%s143 + $0x38] sm:$0xff]
        %v175 = vld [vmem:[%s143 + $0x40] sm:$0xff]
        %v176 = vld [vmem:[%s143 + $0x48] sm:$0xff]
        %v177 = vld [vmem:[%s143 + $0x50] sm:$0xff]
        %v178 = vld [vmem:[%s143 + $0x58] sm:$0xff]
        %v179 = vld [vmem:[%s143 + $0x60] sm:$0xff]
        %v180 = vld [vmem:[%s143 + $0x68] sm:$0xff]
        %v181 = vld [vmem:[%s143 + $0x70] sm:$0xff]
        %v182 = vld [vmem:[%s143 + $0x78] sm:$0xff]
        %v183 = vld [vmem:[%s143 + $0x80] sm:$0xff]
        %v184 = vld [vmem:[%s143 + $0x88] sm:$0xff]
        %v185 = vld [vmem:[%s143 + $0x90] sm:$0xff]
        %v186 = vld [vmem:[%s143 + $0x98] sm:$0xff]
        %v187 = vld [vmem:[%s143 + $0xa0] sm:$0xff]
        %v188 = vld [vmem:[%s143 + $0xa8] sm:$0xff]
        %v189 = vld [vmem:[%s143 + $0xb0] sm:$0xff]
        %v190 = vld [vmem:[%s143 + $0xb8] sm:$0xff]
        %v191 = vld [vmem:[%s143 + $0xc0] sm:$0xff]
        %v192 = vld [vmem:[%s143 + $0xc8] sm:$0xff]
        %v193 = vld [vmem:[%s143 + $0xd0] sm:$0xff]
        %v194 = vld [vmem:[%s143 + $0xd8] sm:$0xff]
        %v195 = vld [vmem:[%s143 + $0xe0] sm:$0xff]
        %v196 = vld [vmem:[%s143 + $0xe8] sm:$0xff]
        %v197 = vld [vmem:[%s143 + $0xf0] sm:$0xff]
        %v198 = vld [vmem:[%s143 + $0xf8] sm:$0xff]
        %v199 = vld [vmem:[%s143 + $0x100] sm:$0xff]
        %v200 = vld [vmem:[%s143 + $0x108] sm:$0xff]
        %v201 = vld [vmem:[%s143 + $0x110] sm:$0xff]
        %v202 = vld [vmem:[%s143 + $0x118] sm:$0xff]
        %v203 = vld [vmem:[%s143 + $0x120] sm:$0xff]
        %v204 = vld [vmem:[%s143 + $0x128] sm:$0xff]
        %v205 = vld [vmem:[%s143 + $0x130] sm:$0xff]
        %v206 = vld [vmem:[%s143 + $0x138] sm:$0xff]
        %v207 = vld [vmem:[%s143 + $0x140] sm:$0xff]
        %v208 = vld [vmem:[%s143 + $0x148] sm:$0xff]
        %v209 = vld [vmem:[%s143 + $0x150] sm:$0xff]
        %v210 = vld [vmem:[%s143 + $0x158] sm:$0xff]
        %v211 = vld [vmem:[%s143 + $0x160] sm:$0xff]
        %v212 = vld [vmem:[%s143 + $0x168] sm:$0xff]
        %v213 = vld [vmem:[%s143 + $0x170] sm:$0xff]
        %v214 = vld [vmem:[%s143 + $0x178] sm:$0xff]
        %v215 = vld [vmem:[%s143 + $0x180] sm:$0xff]
        %v216 = vld [vmem:[%s143 + $0x188] sm:$0xff]
        %v217 = vld [vmem:[%s143 + $0x190] sm:$0xff]
        %v218 = vld [vmem:[%s143 + $0x198] sm:$0xff]
        %v219 = vld [vmem:[%s143 + $0x1a0] sm:$0xff]
        %v220 = vld [vmem:[%s143 + $0x1a8] sm:$0xff]
        %v221 = vld [vmem:[%s143 + $0x1b0] sm:$0xff]
        %v222 = vld [vmem:[%s143 + $0x1b8] sm:$0xff]
        %v223 = vld [vmem:[%s143 + $0x1c0] sm:$0xff]
        %v224 = vld [vmem:[%s143 + $0x1c8] sm:$0xff]
        %v225 = vld [vmem:[%s143 + $0x1d0] sm:$0xff]
        %v226 = vld [vmem:[%s143 + $0x1d8] sm:$0xff]
        %v227 = vld [vmem:[%s143 + $0x1e0] sm:$0xff]
        %v228 = vld [vmem:[%s143 + $0x1e8] sm:$0xff]
        %v229 = vld [vmem:[%s143 + $0x1f0] sm:$0xff]
        %v230 = vld [vmem:[%s143 + $0x1f8] sm:$0xff]
        %v231 = vstv %s166
        %v232 = vadd.f32 %v167, %v231
        %v233 = vadd.f32 %v168, %v231
        %v234 = vadd.f32 %v169, %v231
        %v235 = vadd.f32 %v170, %v231
        %v236 = vadd.f32 %v171, %v231
        %v237 = vadd.f32 %v172, %v231
        %v238 = vadd.f32 %v173, %v231
        %v239 = vadd.f32 %v174, %v231
        %v240 = vadd.f32 %v175, %v231
        %v241 = vadd.f32 %v176, %v231
        %v242 = vadd.f32 %v177, %v231
        %v243 = vadd.f32 %v178, %v231
        %v244 = vadd.f32 %v179, %v231
        %v245 = vadd.f32 %v180, %v231
        %v246 = vadd.f32 %v181, %v231
        %v247 = vadd.f32 %v182, %v231
        %v248 = vadd.f32 %v183, %v231
        %v249 = vadd.f32 %v184, %v231
        %v250 = vadd.f32 %v185, %v231
        %v251 = vadd.f32 %v186, %v231
        %v252 = vadd.f32 %v187, %v231
        %v253 = vadd.f32 %v188, %v231
        %v254 = vadd.f32 %v189, %v231
        %v255 = vadd.f32 %v190, %v231
        %v256 = vadd.f32 %v191, %v231
        %v257 = vadd.f32 %v192, %v231
        %v258 = vadd.f32 %v193, %v231
        %v259 = vadd.f32 %v194, %v231
        %v260 = vadd.f32 %v195, %v231
        %v261 = vadd.f32 %v196, %v231
        %v262 = vadd.f32 %v197, %v231
        %v263 = vadd.f32 %v198, %v231
        %v264 = vadd.f32 %v199, %v231
        %v265 = vadd.f32 %v200, %v231
        %v266 = vadd.f32 %v201, %v231
        %v267 = vadd.f32 %v202, %v231
        %v268 = vadd.f32 %v203, %v231
        %v269 = vadd.f32 %v204, %v231
        %v270 = vadd.f32 %v205, %v231
        %v271 = vadd.f32 %v206, %v231
        %v272 = vadd.f32 %v207, %v231
        %v273 = vadd.f32 %v208, %v231
        %v274 = vadd.f32 %v209, %v231
        %v275 = vadd.f32 %v210, %v231
        %v276 = vadd.f32 %v211, %v231
        %v277 = vadd.f32 %v212, %v231
        %v278 = vadd.f32 %v213, %v231
        %v279 = vadd.f32 %v214, %v231
        %v280 = vadd.f32 %v215, %v231
        %v281 = vadd.f32 %v216, %v231
        %v282 = vadd.f32 %v217, %v231
        %v283 = vadd.f32 %v218, %v231
        %v284 = vadd.f32 %v219, %v231
        %v285 = vadd.f32 %v220, %v231
        %v286 = vadd.f32 %v221, %v231
        %v287 = vadd.f32 %v222, %v231
        %v288 = vadd.f32 %v223, %v231
        %v289 = vadd.f32 %v224, %v231
        %v290 = vadd.f32 %v225, %v231
        %v291 = vadd.f32 %v226, %v231
        %v292 = vadd.f32 %v227, %v231
        %v293 = vadd.f32 %v228, %v231
        %v294 = vadd.f32 %v229, %v231
        %v295 = vadd.f32 %v230, %v231
        %296 = vst [vmem:[%s163] sm:$0xff] %v232
        %297 = vst [vmem:[%s163 + $0x8] sm:$0xff] %v233
        %298 = vst [vmem:[%s163 + $0x10] sm:$0xff] %v234
        %299 = vst [vmem:[%s163 + $0x18] sm:$0xff] %v235
        %300 = vst [vmem:[%s163 + $0x20] sm:$0xff] %v236
        %301 = vst [vmem:[%s163 + $0x28] sm:$0xff] %v237
        %302 = vst [vmem:[%s163 + $0x30] sm:$0xff] %v238
        %303 = vst [vmem:[%s163 + $0x38] sm:$0xff] %v239
        %304 = vst [vmem:[%s163 + $0x40] sm:$0xff] %v240
        %305 = vst [vmem:[%s163 + $0x48] sm:$0xff] %v241
        %306 = vst [vmem:[%s163 + $0x50] sm:$0xff] %v242
        %307 = vst [vmem:[%s163 + $0x58] sm:$0xff] %v243
        %308 = vst [vmem:[%s163 + $0x60] sm:$0xff] %v244
        %309 = vst [vmem:[%s163 + $0x68] sm:$0xff] %v245
        %310 = vst [vmem:[%s163 + $0x70] sm:$0xff] %v246
        %311 = vst [vmem:[%s163 + $0x78] sm:$0xff] %v247
        %312 = vst [vmem:[%s163 + $0x80] sm:$0xff] %v248
        %313 = vst [vmem:[%s163 + $0x88] sm:$0xff] %v249
        %314 = vst [vmem:[%s163 + $0x90] sm:$0xff] %v250
        %315 = vst [vmem:[%s163 + $0x98] sm:$0xff] %v251
        %316 = vst [vmem:[%s163 + $0xa0] sm:$0xff] %v252
        %317 = vst [vmem:[%s163 + $0xa8] sm:$0xff] %v253
        %318 = vst [vmem:[%s163 + $0xb0] sm:$0xff] %v254
        %319 = vst [vmem:[%s163 + $0xb8] sm:$0xff] %v255
        %320 = vst [vmem:[%s163 + $0xc0] sm:$0xff] %v256
        %321 = vst [vmem:[%s163 + $0xc8] sm:$0xff] %v257
        %322 = vst [vmem:[%s163 + $0xd0] sm:$0xff] %v258
        %323 = vst [vmem:[%s163 + $0xd8] sm:$0xff] %v259
        %324 = vst [vmem:[%s163 + $0xe0] sm:$0xff] %v260
        %325 = vst [vmem:[%s163 + $0xe8] sm:$0xff] %v261
        %326 = vst [vmem:[%s163 + $0xf0] sm:$0xff] %v262
        %327 = vst [vmem:[%s163 + $0xf8] sm:$0xff] %v263
        %328 = vst [vmem:[%s163 + $0x100] sm:$0xff] %v264
        %329 = vst [vmem:[%s163 + $0x108] sm:$0xff] %v265
        %330 = vst [vmem:[%s163 + $0x110] sm:$0xff] %v266
        %331 = vst [vmem:[%s163 + $0x118] sm:$0xff] %v267
        %332 = vst [vmem:[%s163 + $0x120] sm:$0xff] %v268
        %333 = vst [vmem:[%s163 + $0x128] sm:$0xff] %v269
        %334 = vst [vmem:[%s163 + $0x130] sm:$0xff] %v270
        %335 = vst [vmem:[%s163 + $0x138] sm:$0xff] %v271
        %336 = vst [vmem:[%s163 + $0x140] sm:$0xff] %v272
        %337 = vst [vmem:[%s163 + $0x148] sm:$0xff] %v273
        %338 = vst [vmem:[%s163 + $0x150] sm:$0xff] %v274
        %339 = vst [vmem:[%s163 + $0x158] sm:$0xff] %v275
        %340 = vst [vmem:[%s163 + $0x160] sm:$0xff] %v276
        %341 = vst [vmem:[%s163 + $0x168] sm:$0xff] %v277
        %342 = vst [vmem:[%s163 + $0x170] sm:$0xff] %v278
        %343 = vst [vmem:[%s163 + $0x178] sm:$0xff] %v279
        %344 = vst [vmem:[%s163 + $0x180] sm:$0xff] %v280
        %345 = vst [vmem:[%s163 + $0x188] sm:$0xff] %v281
        %346 = vst [vmem:[%s163 + $0x190] sm:$0xff] %v282
        %347 = vst [vmem:[%s163 + $0x198] sm:$0xff] %v283
        %348 = vst [vmem:[%s163 + $0x1a0] sm:$0xff] %v284
        %349 = vst [vmem:[%s163 + $0x1a8] sm:$0xff] %v285
        %350 = vst [vmem:[%s163 + $0x1b0] sm:$0xff] %v286
        %351 = vst [vmem:[%s163 + $0x1b8] sm:$0xff] %v287
        %352 = vst [vmem:[%s163 + $0x1c0] sm:$0xff] %v288
        %353 = vst [vmem:[%s163 + $0x1c8] sm:$0xff] %v289
        %354 = vst [vmem:[%s163 + $0x1d0] sm:$0xff] %v290
        %355 = vst [vmem:[%s163 + $0x1d8] sm:$0xff] %v291
        %356 = vst [vmem:[%s163 + $0x1e0] sm:$0xff] %v292
        %357 = vst [vmem:[%s163 + $0x1e8] sm:$0xff] %v293
        %358 = vst [vmem:[%s163 + $0x1f0] sm:$0xff] %v294
        %359 = vst [vmem:[%s163 + $0x1f8] sm:$0xff] %v295
        %s360 = sand.u32 %s75, 1
        %s361 = scalar_lea.sflag [#allocation5], %s360
        %s362 = sand.u32 %s75, 1
        %s363 = smul.addr %s362, 512
        %s364 = scalar_lea.vmem [#allocation6], %s363
        // Predicated region
        $region33: #{tpu_custom_call.1} parent=27 // pred_check
          %p365 = pneg %p85
        $region34: #{tpu_custom_call.1} parent=27 // pred_check_branch
          %367 = sbr.rel (%p365) target = $region36
        $region35: #{tpu_custom_call.1} parent=27 // pred_region
          %s368 = smul.u32 4, %s20
          %s370 = ssub.s32 8192, 8192
          %371 = vsyncadd %s361, %s370
          %s372 = smul.addr %s368, 16
          %s373 = smul.addr %s372, 128
          %s374 = scalar_lea.hbm %s2, %s373
          %s375 = sshll.u32 %s364, 4
          %s376 = int_to_ptr.vmem [resolvable:$true] %s375
          %381 = dma.vmem_to_hbm [thread:$0]  %s376, 8192, %s374, %s361, 2048, 2048, 128
        $region36: #{tpu_custom_call.1} parent=27 // pred_fallthru
          _
      $region28: #{tpu_custom_call.1} parent=5 // pred_fallthru
        _
      %p382 = scmp.le.s32.totalorder 2, %s15
      // Predicated region
      $region37: #{tpu_custom_call.1} parent=5 // pred_check
        %p383 = pneg %p382
      $region38: #{tpu_custom_call.1} parent=5 // pred_check_branch
        %385 = sbr.rel (%p383) target = $region40
      $region39: #{tpu_custom_call.1} parent=5 // pred_region
        %s386 = ssub.s32 %s15, 2
        // Predicated region
        $region41: #{tpu_custom_call.1} parent=39 // pred_check
          %p387 = pneg %p91
        $region42: #{tpu_custom_call.1} parent=39 // pred_check_branch
          %389 = sbr.rel (%p387) target = $region44
        $region43: #{tpu_custom_call.1} parent=39 // pred_region
          %s390 = sand.u32 %s76, 1
          %s391 = scalar_lea.sflag [#allocation5], %s390
          %s392 = sand.u32 %s76, 1
          %s393 = smul.addr %s392, 512
          %s394 = scalar_lea.vmem [#allocation6], %s393
          %395 = dma.done %s391, 8192
        $region44: #{tpu_custom_call.1} parent=39 // pred_fallthru
          _
      $region40: #{tpu_custom_call.1} parent=5 // pred_fallthru
        _
    $region6: #{tpu_custom_call.1} parent=1 // loop_footer
      %s19 = sadd.s32 1, %s15
    $region7: #{tpu_custom_call.1} parent=1 // loop_footer_branch
      %14 = sbr.rel target = $region3
    $region8: #{tpu_custom_call.1} parent=1 // loop_exit
      _
    %396 = vsyncpa [#allocation4], 1
    %s397 = scalar_lea.sflag [#allocation4], 1
    %398 = vsyncpa %s397, 1
    %399 = vsyncpa [#allocation5], 1
    %s400 = scalar_lea.sflag [#allocation5], 1
    %401 = vsyncpa %s400, 1

</llo_original>
